<compile_context>
chip_gen: v6e
topology: v6e:2x2x1
jax: 0.10.0
libtpu: 0.0.40
codegen_flags: <defaults>
</compile_context>

<pallas_src>
import jax
import jax.numpy as jnp
from jax.experimental import pallas as pl
from jax.experimental.pallas import tpu as pltpu


def _round_up(x, m):
    return ((x + m - 1) // m) * m


def _collapse_kernel(x_ref, o_ref):
    # x_ref: (15, TB)  row 5*i+j = input[..., i, j]   (flattened 3x5, batch-last)
    # o_ref: (12, TB)  row 4*i+k = output[..., i, k]  (flattened 3x4, batch-last)
    x = x_ref[...]
    xf = x.astype(jnp.float32)          # accumulate in f32 even for bf16 inputs

    # Pivot components p_0, p_1, p_2 (each (1, TB), lane-dense).
    p0 = xf[4:5, :]
    p1 = xf[9:10, :]
    p2 = xf[14:15, :]

    # Pass-through rotation rows: three contiguous sublane-slice copies,
    # written straight into o_ref (no concatenate / extra VMEM temporary).
    o_ref[0:3, :] = x[0:3, :]
    o_ref[4:7, :] = x[5:8, :]
    o_ref[8:11, :] = x[10:13, :]

    # Translation rows: t_i + p_i - (R @ p)_i, unrolled VPU multiply-adds.
    dt = o_ref.dtype
    o_ref[3:4, :] = (
        xf[3:4, :] + p0 - (xf[0:1, :] * p0 + xf[1:2, :] * p1 + xf[2:3, :] * p2)
    ).astype(dt)
    o_ref[7:8, :] = (
        xf[8:9, :] + p1 - (xf[5:6, :] * p0 + xf[6:7, :] * p1 + xf[7:8, :] * p2)
    ).astype(dt)
    o_ref[11:12, :] = (
        xf[13:14, :] + p2 - (xf[10:11, :] * p0 + xf[11:12, :] * p1 + xf[12:13, :] * p2)
    ).astype(dt)


def collapse_rt_pivots(x, *, max_lane_tile=32768, target_steps=8,
                       min_payload_lanes=4096):
    """x: (batch, num_se3, 3, 5) float array -> (batch, num_se3, 3, 4)."""
    batch, num_se3, num_rows, num_cols = x.shape
    assert num_rows == 3 and num_cols == 5
    B = batch * num_se3

    # ---- lane-tile / grid selection ---------------------------------------
    B128 = _round_up(B, 128)                       # lanes rounded to the lane tile
    cap = max(128, (max_lane_tile // 128) * 128)   # VMEM cap (multiple of 128)
    payload_floor = min(_round_up(min_payload_lanes, 128), B128)
    lt = _round_up(pl.cdiv(B128, target_steps), 128)  # aim for ~target_steps blocks
    lt = max(lt, payload_floor)                    # per-step payload above overhead knee
    lt = min(lt, cap, B128)                        # never exceed problem / VMEM budget
    grid = pl.cdiv(B, lt)                          # ragged last block masked by Pallas

    # Batch-last, lane-dense presentation of the data (no pad pass needed).
    # TODO(synk): this transpose and the one below are the remaining extra HBM traffic.
    xt = jnp.transpose(x.reshape(B, 15), (1, 0))   # (15, B)

    out = pl.pallas_call(
        _collapse_kernel,
        out_shape=jax.ShapeDtypeStruct((12, B), x.dtype),
        grid_spec=pltpu.PrefetchScalarGridSpec(
            num_scalar_prefetch=0,
            grid=(grid,),
            in_specs=[pl.BlockSpec((15, lt), lambda i: (0, i))],
            out_specs=pl.BlockSpec((12, lt), lambda i: (0, i)),
        ),
        compiler_params=pltpu.CompilerParams(
            dimension_semantics=("parallel",),
            # ~6.75 MiB double-buffered at the largest tile; 32 MiB leaves
            # headroom while staying inside v7x's 64 MiB physical VMEM.
            vmem_limit_bytes=32 * 1024 * 1024,
        ),
    )(xt)

    return jnp.transpose(out, (1, 0)).reshape(batch, num_se3, 3, 4)


def _reference(x):
    """Pure-JAX (f32) reference mirroring the PyTorch forward."""
    batch, num_se3, _, _ = x.shape
    xv = x.astype(jnp.float32).reshape(-1, 3, 5)
    r = xv[:, :, 0:3]
    t = xv[:, :, 3:4]
    p = xv[:, :, 4:5]
    rp = jnp.einsum('bij,bjk->bik', r, p)
    out = jnp.concatenate([r, t + p - rp], axis=2)
    return out.reshape(batch, num_se3, 3, 4)


def _check(batch, num_se3, key, dtype=jnp.float32, atol=1e-5, rtol=1e-5, **kw):
    x = jax.random.normal(key, (batch, num_se3, 3, 5), dtype=jnp.float32).astype(dtype)
    y = jax.block_until_ready(collapse_rt_pivots(x, **kw))
    y_ref = _reference(x)
    assert y.shape == (batch, num_se3, 3, 4)
    assert y.dtype == dtype
    assert bool(jnp.allclose(y.astype(jnp.float32), y_ref, atol=atol, rtol=rtol)), (
        f"mismatch for batch={batch} num_se3={num_se3} dtype={dtype}")


if __name__ == "__main__":
    key = jax.random.PRNGKey(0)
    k0, k1, k2, k3 = jax.random.split(key, 4)

    # Tiny B: single (partially filled) 128-lane block, masked load/store path.
    _check(2, 8, k0)

    # Multi-step grid with a ragged last block: B=600, lt=256 -> 3 grid steps,
    # last step covers only 88 real lanes (tests Pallas OOB masking, B % lt != 0).
    _check(12, 50, k1, max_lane_tile=256, target_steps=3, min_payload_lanes=128)

    # Moderate B with the default tile selection.
    _check(64, 8, k2)

    # bf16 boundary dtype: f32 accumulation inside the kernel.
    _check(8, 16, k3, dtype=jnp.bfloat16, atol=1e-2, rtol=1e-2)

    print("KERNEL_OK")
</pallas_src>

<mosaic_0001>
module attributes {stable_mosaic.version = 11 : i64} {
  func.func @_collapse_kernel(%arg0: i32, %arg1: memref<15x128xf32, #tpu.memory_space<vmem>>, %arg2: memref<12x128xf32, #tpu.memory_space<vmem>>) attributes {dimension_semantics = [#tpu.dimension_semantics<parallel>], iteration_bounds = array<i64: 1>, scalar_prefetch = 0 : i64, scratch_operands = 0 : i64, tpu.core_type = #tpu.core_type<tc>, window_params = [{transform_indices = @transform_0, window_bounds = array<i64: 15, 128>}, {transform_indices = @transform_1, window_bounds = array<i64: 12, 128>}]} {
    %c0 = arith.constant 0 : index
    %c0_0 = arith.constant 0 : index
    %0 = vector.load %arg1[%c0, %c0_0] : memref<15x128xf32, #tpu.memory_space<vmem>>, vector<15x128xf32>
    %1 = vector.extract_strided_slice %0 {offsets = [4, 0], sizes = [1, 128], strides = [1, 1]} : vector<15x128xf32> to vector<1x128xf32>
    %2 = vector.extract_strided_slice %0 {offsets = [9, 0], sizes = [1, 128], strides = [1, 1]} : vector<15x128xf32> to vector<1x128xf32>
    %3 = vector.extract_strided_slice %0 {offsets = [14, 0], sizes = [1, 128], strides = [1, 1]} : vector<15x128xf32> to vector<1x128xf32>
    %4 = vector.extract_strided_slice %0 {offsets = [0, 0], sizes = [3, 128], strides = [1, 1]} : vector<15x128xf32> to vector<3x128xf32>
    %c0_1 = arith.constant 0 : index
    %c0_2 = arith.constant 0 : index
    %5 = vector.load %arg2[%c0_1, %c0_2] : memref<12x128xf32, #tpu.memory_space<vmem>>, vector<3x128xf32>
    tpu.vector_store %arg2[%c0_1, %c0_2], %4 {strides = array<i32>} : memref<12x128xf32, #tpu.memory_space<vmem>>, vector<3x128xf32>,
    %6 = vector.extract_strided_slice %0 {offsets = [5, 0], sizes = [3, 128], strides = [1, 1]} : vector<15x128xf32> to vector<3x128xf32>
    %c4 = arith.constant 4 : index
    %c0_3 = arith.constant 0 : index
    %7 = vector.load %arg2[%c4, %c0_3] : memref<12x128xf32, #tpu.memory_space<vmem>>, vector<3x128xf32>
    tpu.vector_store %arg2[%c4, %c0_3], %6 {strides = array<i32>} : memref<12x128xf32, #tpu.memory_space<vmem>>, vector<3x128xf32>,
    %8 = vector.extract_strided_slice %0 {offsets = [10, 0], sizes = [3, 128], strides = [1, 1]} : vector<15x128xf32> to vector<3x128xf32>
    %c8 = arith.constant 8 : index
    %c0_4 = arith.constant 0 : index
    %9 = vector.load %arg2[%c8, %c0_4] : memref<12x128xf32, #tpu.memory_space<vmem>>, vector<3x128xf32>
    tpu.vector_store %arg2[%c8, %c0_4], %8 {strides = array<i32>} : memref<12x128xf32, #tpu.memory_space<vmem>>, vector<3x128xf32>,
    %10 = vector.extract_strided_slice %0 {offsets = [3, 0], sizes = [1, 128], strides = [1, 1]} : vector<15x128xf32> to vector<1x128xf32>
    %11 = arith.addf %10, %1 : vector<1x128xf32>
    %12 = vector.extract_strided_slice %0 {offsets = [0, 0], sizes = [1, 128], strides = [1, 1]} : vector<15x128xf32> to vector<1x128xf32>
    %13 = arith.mulf %12, %1 : vector<1x128xf32>
    %14 = vector.extract_strided_slice %0 {offsets = [1, 0], sizes = [1, 128], strides = [1, 1]} : vector<15x128xf32> to vector<1x128xf32>
    %15 = arith.mulf %14, %2 : vector<1x128xf32>
    %16 = arith.addf %13, %15 : vector<1x128xf32>
    %17 = vector.extract_strided_slice %0 {offsets = [2, 0], sizes = [1, 128], strides = [1, 1]} : vector<15x128xf32> to vector<1x128xf32>
    %18 = arith.mulf %17, %3 : vector<1x128xf32>
    %19 = arith.addf %16, %18 : vector<1x128xf32>
    %20 = arith.subf %11, %19 : vector<1x128xf32>
    %c3 = arith.constant 3 : index
    %c0_5 = arith.constant 0 : index
    %21 = vector.load %arg2[%c3, %c0_5] : memref<12x128xf32, #tpu.memory_space<vmem>>, vector<1x128xf32>
    tpu.vector_store %arg2[%c3, %c0_5], %20 {strides = array<i32>} : memref<12x128xf32, #tpu.memory_space<vmem>>, vector<1x128xf32>,
    %22 = vector.extract_strided_slice %0 {offsets = [8, 0], sizes = [1, 128], strides = [1, 1]} : vector<15x128xf32> to vector<1x128xf32>
    %23 = arith.addf %22, %2 : vector<1x128xf32>
    %24 = vector.extract_strided_slice %0 {offsets = [5, 0], sizes = [1, 128], strides = [1, 1]} : vector<15x128xf32> to vector<1x128xf32>
    %25 = arith.mulf %24, %1 : vector<1x128xf32>
    %26 = vector.extract_strided_slice %0 {offsets = [6, 0], sizes = [1, 128], strides = [1, 1]} : vector<15x128xf32> to vector<1x128xf32>
    %27 = arith.mulf %26, %2 : vector<1x128xf32>
    %28 = arith.addf %25, %27 : vector<1x128xf32>
    %29 = vector.extract_strided_slice %0 {offsets = [7, 0], sizes = [1, 128], strides = [1, 1]} : vector<15x128xf32> to vector<1x128xf32>
    %30 = arith.mulf %29, %3 : vector<1x128xf32>
    %31 = arith.addf %28, %30 : vector<1x128xf32>
    %32 = arith.subf %23, %31 : vector<1x128xf32>
    %c7 = arith.constant 7 : index
    %c0_6 = arith.constant 0 : index
    %33 = vector.load %arg2[%c7, %c0_6] : memref<12x128xf32, #tpu.memory_space<vmem>>, vector<1x128xf32>
    tpu.vector_store %arg2[%c7, %c0_6], %32 {strides = array<i32>} : memref<12x128xf32, #tpu.memory_space<vmem>>, vector<1x128xf32>,
    %34 = vector.extract_strided_slice %0 {offsets = [13, 0], sizes = [1, 128], strides = [1, 1]} : vector<15x128xf32> to vector<1x128xf32>
    %35 = arith.addf %34, %3 : vector<1x128xf32>
    %36 = vector.extract_strided_slice %0 {offsets = [10, 0], sizes = [1, 128], strides = [1, 1]} : vector<15x128xf32> to vector<1x128xf32>
    %37 = arith.mulf %36, %1 : vector<1x128xf32>
    %38 = vector.extract_strided_slice %0 {offsets = [11, 0], sizes = [1, 128], strides = [1, 1]} : vector<15x128xf32> to vector<1x128xf32>
    %39 = arith.mulf %38, %2 : vector<1x128xf32>
    %40 = arith.addf %37, %39 : vector<1x128xf32>
    %41 = vector.extract_strided_slice %0 {offsets = [12, 0], sizes = [1, 128], strides = [1, 1]} : vector<15x128xf32> to vector<1x128xf32>
    %42 = arith.mulf %41, %3 : vector<1x128xf32>
    %43 = arith.addf %40, %42 : vector<1x128xf32>
    %44 = arith.subf %35, %43 : vector<1x128xf32>
    %c11 = arith.constant 11 : index
    %c0_7 = arith.constant 0 : index
    %45 = vector.load %arg2[%c11, %c0_7] : memref<12x128xf32, #tpu.memory_space<vmem>>, vector<1x128xf32>
    tpu.vector_store %arg2[%c11, %c0_7], %44 {strides = array<i32>} : memref<12x128xf32, #tpu.memory_space<vmem>>, vector<1x128xf32>,
    return
  }
  func.func @transform_0(%arg0: i32) -> (i32, i32) {
    %c0_i32 = arith.constant 0 : i32
    %c0_i32_0 = arith.constant 0 : i32
    return %c0_i32, %arg0 : i32, i32
  }
  func.func @transform_1(%arg0: i32) -> (i32, i32) {
    %c0_i32 = arith.constant 0 : i32
    %c0_i32_0 = arith.constant 0 : i32
    return %c0_i32, %arg0 : i32, i32
  }
}

</mosaic_0001>

<llo_original>
// kernel: tpu_custom_call.1
$region0: #{tpu_custom_call.1}
  #allocation0 [shape = 'u32[]', space=smem, size = 0x4, offset = 0x4, fixed_abs, tag = 'smem constant byte address 0x4 - core index']
  #allocation1 [shape = 'u32[144,128]{1,0:T(1,128)}', space=vmem, size = 0x12000, scoped, tag = 'internal scratch']
  %s0 = inlined_call_operand.hbm [shape: f32[15,16], index: 0, kind: input, shape index: {}]
  %s1 = inlined_call_operand.hbm [shape: f32[12,16], index: 1, kind: output, shape index: {}]
  %s2 = sld [smem:[#allocation0]]
  $region18: #{tpu_custom_call.1} parent=0
    _
  %s4 = ssub.s32 1, %s2
  %s5 = scalar_select 0, %s4, %s2
  $region1: #{tpu_custom_call.1} parent=0
    #allocation2 [shape = 'u8[8192]{0}', space=vmem, size = 0x2000, scoped, tag = 'input window, operand 0, single buffered']
    #allocation3 [shape = 's32[1]{0}', space=sflag, size = 0x4, scoped, tag = 'scoped memory for tpu_custom_call.1']
    #allocation4 [shape = 's32[1]{0}', space=sflag, size = 0x4, scoped, tag = 'scoped memory for tpu_custom_call.1']
    #allocation5 [shape = 'u8[8192]{0}', space=vmem, size = 0x2000, scoped, tag = 'output window, operand 0, single buffered']
    %6 = vsyncpa [#allocation3], 0
    %7 = vsyncpa [#allocation4], 0
    // Predicated region
    $region2: #{tpu_custom_call.1} parent=1 // pred_check
      _
    $region3: #{tpu_custom_call.1} parent=1 // pred_check_branch
      %9 = sbr.rel (0) target = $region5
    $region4: #{tpu_custom_call.1} parent=1 // pred_region
      %s11 = ssub.s32 256, 256
      %12 = vsyncadd [#allocation3], %s11
      %s13 = sshll.u32 [#allocation2], 4
      %s14 = int_to_ptr.vmem [resolvable:$true] %s13
      %19 = dma.hbm_to_vmem [thread:$0]  %s0, 256, %s14, [#allocation3], 128, 128, 8
    $region5: #{tpu_custom_call.1} parent=1 // pred_fallthru
      _
    // Predicated region
    $region6: #{tpu_custom_call.1} parent=1 // pred_check
      _
    $region7: #{tpu_custom_call.1} parent=1 // pred_check_branch
      %21 = sbr.rel (0) target = $region9
    $region8: #{tpu_custom_call.1} parent=1 // pred_region
      %22 = dma.done [#allocation3], 256
    $region9: #{tpu_custom_call.1} parent=1 // pred_fallthru
      _
    %v23 = vld [vmem:[#allocation2] sm:$0xff]
    %v24 = vld [vmem:[#allocation2 + $0x8] sm:$0x7f]
    %25 = vst [vmem:[#allocation5] sm:$0x7] %v23
    %26 = vst [vmem:[#allocation5 - $0x1] sm:$0xe0] %v23
    %27 = vst [vmem:[#allocation5 + $0x6] sm:$0x1c] %v24
    %v29 = vrot.slane %v23, 1
    %v31 = vadd.f32 %v23, %v29
    %v32 = vrot.slane %v23, 4
    %v34 = vmul.f32 %v23, %v32
    %v35 = vmul.f32 %v23, %v24
    %v37 = vrot.slane %v35, 1
    %v39 = vadd.f32 %v34, %v37
    %v41 = vrot.slane %v24, 4
    %v43 = vmul.f32 %v23, %v41
    %v45 = vrot.slane %v43, 2
    %v47 = vadd.f32 %v39, %v45
    %v49 = vrot.slane %v47, 5
    %v51 = vsub.f32 %v31, %v49
    %52 = vst [vmem:[#allocation5] sm:$0x8] %v51
    %v53 = vrot.slane %v24, 1
    %v55 = vadd.f32 %v24, %v53
    %v56 = vrot.slane %v23, 7
    %v58 = vmul.f32 %v23, %v56
    %v59 = vrot.slane %v24, 3
    %v61 = vmul.f32 %v23, %v59
    %v63 = vrot.slane %v61, 1
    %v65 = vadd.f32 %v58, %v63
    %v66 = vrot.slane %v24, 7
    %v68 = vmul.f32 %v23, %v66
    %v70 = vrot.slane %v68, 2
    %v72 = vadd.f32 %v65, %v70
    %v74 = vrot.slane %v72, 5
    %v76 = vsub.f32 %v55, %v74
    %77 = vst [vmem:[#allocation5 + $0x7] sm:$0x1] %v76
    %v78 = vrot.slane %v23, 2
    %v80 = vmul.f32 %v24, %v78
    %v81 = vrot.slane %v24, 6
    %v83 = vmul.f32 %v24, %v81
    %v85 = vrot.slane %v83, 1
    %v87 = vadd.f32 %v80, %v85
    %v88 = vrot.slane %v24, 2
    %v90 = vmul.f32 %v24, %v88
    %v92 = vrot.slane %v90, 2
    %v94 = vadd.f32 %v87, %v92
    %v96 = vrot.slane %v94, 5
    %v98 = vsub.f32 %v55, %v96
    %99 = vst [vmem:[#allocation5 + $0x6] sm:$0x20] %v98
    // Predicated region
    $region10: #{tpu_custom_call.1} parent=1 // pred_check
      _
    $region11: #{tpu_custom_call.1} parent=1 // pred_check_branch
      %101 = sbr.rel (0) target = $region13
    $region12: #{tpu_custom_call.1} parent=1 // pred_region
      %s103 = ssub.s32 256, 256
      %104 = vsyncadd [#allocation4], %s103
      %s105 = sshll.u32 [#allocation5], 4
      %s106 = int_to_ptr.vmem [resolvable:$true] %s105
      %111 = dma.vmem_to_hbm [thread:$0]  %s106, 256, %s1, [#allocation4], 128, 128, 8
    $region13: #{tpu_custom_call.1} parent=1 // pred_fallthru
      _
    // Predicated region
    $region14: #{tpu_custom_call.1} parent=1 // pred_check
      _
    $region15: #{tpu_custom_call.1} parent=1 // pred_check_branch
      %113 = sbr.rel (0) target = $region17
    $region16: #{tpu_custom_call.1} parent=1 // pred_region
      %114 = dma.done [#allocation4], 256
    $region17: #{tpu_custom_call.1} parent=1 // pred_fallthru
      _
    %115 = vsyncpa [#allocation3], 1
    %116 = vsyncpa [#allocation4], 1

</llo_original>
